<compile_context>
chip_gen: v7x
topology: tpu7x:2x2x1
jax: 0.10.0
libtpu: 0.0.40
codegen_flags: <defaults>
</compile_context>

<pallas_src>
import functools

import jax
import jax.numpy as jnp
from jax.experimental import pallas as pl
from jax.experimental.pallas import tpu as pltpu


def _round_up(x, m):
    return (x + m - 1) // m * m


def _cc_loss_kernel(x_ref, out_ref, sum_ref, *, inv_spatial):
    """x_ref: (NB, 3, TS) tile; out_ref: (NB, 1); sum_ref: VMEM (NB, 3) f32."""
    s = pl.program_id(1)

    @pl.when(s == 0)
    def _():
        sum_ref[...] = jnp.zeros_like(sum_ref)

    # Streaming per-channel partial sums for this spatial tile. The f32 cast
    # fuses into the lane reduction and the block is capped at ~4 MiB, so no
    # full-image f32 copy / vreg spill is created.
    sum_ref[...] += jnp.sum(x_ref[...].astype(jnp.float32), axis=-1)

    @pl.when(s == pl.num_programs(1) - 1)
    def _():
        means = sum_ref[...] * inv_spatial           # (NB, 3) channel means
        r = means[:, 0:1]
        g = means[:, 1:2]
        b = means[:, 2:3]
        out_ref[...] = ((r - g) ** 2 + (r - b) ** 2 + (g - b) ** 2) * (1.0 / 3.0)


def color_constancy_loss(clean_image):
    """clean_image: (N, C, H, W) with C >= 3 (channels 0,1,2 = R,G,B)."""
    N, C, H, W = clean_image.shape
    assert C >= 3, "ColorConstancyLoss needs at least 3 channels"
    S = H * W

    # Only the RGB channels are streamed by the kernel (no-op slice when C==3);
    # reshape to lane-dense (N, 3, H*W) so the spatial axis sits on the 128-lane
    # dimension (unmasked full-width loads, contiguous DMA rows).
    x = clean_image[:, :3].reshape(N, 3, S)

    LANE = 128
    MAX_TS = 32 * 1024                                  # elems / channel / tile
    s_aligned = _round_up(S, LANE)
    n_spatial = max(1, -(-s_aligned // MAX_TS))         # ceil div
    ts = _round_up(-(-s_aligned // n_spatial), LANE)    # multiple of 128
    s_pad = n_spatial * ts

    # Pack several images per grid step (~4 MiB input blocks) to amortize the
    # ~0.35 us per-step overhead. NB is a multiple of 8 (output block-shape
    # constraint) unless it covers the whole (small) batch.
    itemsize = jnp.dtype(x.dtype).itemsize
    tile_bytes = 3 * ts * itemsize
    nb = max(1, (4 << 20) // tile_bytes)
    if nb >= N:
        nb = N
    else:
        nb = max(8, (nb // 8) * 8)
    n_pad = _round_up(N, nb)

    # Zero padding: spatial zeros don't change channel sums (we divide by the
    # true H*W); padded images yield loss 0 and are sliced off before the mean.
    if n_pad != N or s_pad != S:
        x = jnp.pad(x, ((0, n_pad - N), (0, 0), (0, s_pad - S)))

    grid = (n_pad // nb, s_pad // ts)

    per_image = pl.pallas_call(
        functools.partial(_cc_loss_kernel, inv_spatial=1.0 / float(S)),
        out_shape=jax.ShapeDtypeStruct((n_pad, 1), jnp.float32),
        grid=grid,
        in_specs=[pl.BlockSpec((nb, 3, ts), lambda i, s: (i, 0, s))],
        out_specs=pl.BlockSpec((nb, 1), lambda i, s: (i, 0)),
        scratch_shapes=[pltpu.VMEM((nb, 3), jnp.float32)],
        compiler_params=pltpu.CompilerParams(
            dimension_semantics=("parallel", "arbitrary"),
        ),
    )(x)

    # Final batch mean (tiny) in plain JAX so the batch grid axis stays parallel.
    return jnp.mean(per_image[:N, 0])


def _reference(clean_image):
    xf = clean_image.astype(jnp.float32)
    mean_rgb = jnp.mean(xf, axis=(2, 3), keepdims=True)
    r = mean_rgb[:, 0:1]
    g = mean_rgb[:, 1:2]
    b = mean_rgb[:, 2:3]
    loss = ((r - g) ** 2 + (r - b) ** 2 + (g - b) ** 2) / 3.0
    return jnp.mean(loss)


if __name__ == "__main__":
    key = jax.random.PRNGKey(0)
    # NCHW RGBA-style batch: kernel must ignore (and not pay compute for) the
    # non-RGB channel, matching the PyTorch module's behavior.
    x = jax.random.uniform(key, (2, 4, 16, 16), dtype=jnp.float32)

    out = jax.block_until_ready(color_constancy_loss(x))
    ref = _reference(x)
    assert jnp.allclose(out, ref, rtol=1e-5, atol=1e-6), (out, ref)

    print("KERNEL_OK")
</pallas_src>

<mosaic_0001>
module attributes {stable_mosaic.version = 11 : i64} {
  func.func @_cc_loss_kernel(%arg0: i32, %arg1: i32, %arg2: memref<2x3x256xf32, #tpu.memory_space<vmem>>, %arg3: memref<2x1xf32, #tpu.memory_space<vmem>>, %arg4: memref<2x3xf32, #tpu.memory_space<vmem>>) attributes {dimension_semantics = [#tpu.dimension_semantics<parallel>, #tpu.dimension_semantics<arbitrary>], iteration_bounds = array<i64: 1, 1>, scalar_prefetch = 0 : i64, scratch_operands = 1 : i64, tpu.core_type = #tpu.core_type<tc>, window_params = [{transform_indices = @transform_0, window_bounds = array<i64: 2, 3, 256>}, {transform_indices = @transform_1, window_bounds = array<i64: 2, 1>}]} {
    %c0_i32 = arith.constant 0 : i32
    %0 = arith.cmpi eq, %arg1, %c0_i32 : i32
    %1 = arith.extui %0 : i1 to i32
    %c0_i32_0 = arith.constant 0 : i32
    %2 = arith.cmpi ne, %1, %c0_i32_0 : i32
    scf.if %2 {
      %cst_9 = arith.constant 0.000000e+00 : f32
      %11 = vector.broadcast %cst_9 : f32 to vector<2x3xf32>
      %c0_10 = arith.constant 0 : index
      %c0_11 = arith.constant 0 : index
      %12 = vector.load %arg4[%c0_10, %c0_11] : memref<2x3xf32, #tpu.memory_space<vmem>>, vector<2x3xf32>
      tpu.vector_store %arg4[%c0_10, %c0_11], %11 {strides = array<i32>} : memref<2x3xf32, #tpu.memory_space<vmem>>, vector<2x3xf32>,
    } else {
    }
    %c0 = arith.constant 0 : index
    %c0_1 = arith.constant 0 : index
    %3 = vector.load %arg4[%c0, %c0_1] : memref<2x3xf32, #tpu.memory_space<vmem>>, vector<2x3xf32>
    %c0_2 = arith.constant 0 : index
    %c0_3 = arith.constant 0 : index
    %c0_4 = arith.constant 0 : index
    %4 = vector.load %arg2[%c0_2, %c0_3, %c0_4] : memref<2x3x256xf32, #tpu.memory_space<vmem>>, vector<2x3x256xf32>
    %cst = arith.constant dense<0.000000e+00> : vector<2x3xf32>
    %5 = vector.multi_reduction <add>, %4, %cst [2] : vector<2x3x256xf32> to vector<2x3xf32>
    %6 = arith.addf %3, %5 : vector<2x3xf32>
    %c0_5 = arith.constant 0 : index
    %c0_6 = arith.constant 0 : index
    %7 = vector.load %arg4[%c0_5, %c0_6] : memref<2x3xf32, #tpu.memory_space<vmem>>, vector<2x3xf32>
    tpu.vector_store %arg4[%c0_5, %c0_6], %6 {strides = array<i32>} : memref<2x3xf32, #tpu.memory_space<vmem>>, vector<2x3xf32>,
    %c0_i32_7 = arith.constant 0 : i32
    %8 = arith.cmpi eq, %arg1, %c0_i32_7 : i32
    %9 = arith.extui %8 : i1 to i32
    %c0_i32_8 = arith.constant 0 : i32
    %10 = arith.cmpi ne, %9, %c0_i32_8 : i32
    scf.if %10 {
      %c0_9 = arith.constant 0 : index
      %c0_10 = arith.constant 0 : index
      %11 = vector.load %arg4[%c0_9, %c0_10] : memref<2x3xf32, #tpu.memory_space<vmem>>, vector<2x3xf32>
      %cst_11 = arith.constant 3.906250e-03 : f32
      %12 = vector.broadcast %cst_11 : f32 to vector<2x3xf32>
      %13 = arith.mulf %11, %12 : vector<2x3xf32>
      %14 = vector.extract_strided_slice %13 {offsets = [0, 0], sizes = [2, 1], strides = [1, 1]} : vector<2x3xf32> to vector<2x1xf32>
      %15 = vector.extract_strided_slice %13 {offsets = [0, 1], sizes = [2, 1], strides = [1, 1]} : vector<2x3xf32> to vector<2x1xf32>
      %16 = vector.extract_strided_slice %13 {offsets = [0, 2], sizes = [2, 1], strides = [1, 1]} : vector<2x3xf32> to vector<2x1xf32>
      %17 = arith.subf %14, %15 : vector<2x1xf32>
      %18 = arith.mulf %17, %17 : vector<2x1xf32>
      %19 = arith.subf %14, %16 : vector<2x1xf32>
      %20 = arith.mulf %19, %19 : vector<2x1xf32>
      %21 = arith.addf %18, %20 : vector<2x1xf32>
      %22 = arith.subf %15, %16 : vector<2x1xf32>
      %23 = arith.mulf %22, %22 : vector<2x1xf32>
      %24 = arith.addf %21, %23 : vector<2x1xf32>
      %cst_12 = arith.constant 0.333333343 : f32
      %25 = vector.broadcast %cst_12 : f32 to vector<2x1xf32>
      %26 = arith.mulf %24, %25 : vector<2x1xf32>
      %c0_13 = arith.constant 0 : index
      %c0_14 = arith.constant 0 : index
      %27 = vector.load %arg3[%c0_13, %c0_14] : memref<2x1xf32, #tpu.memory_space<vmem>>, vector<2x1xf32>
      tpu.vector_store %arg3[%c0_13, %c0_14], %26 {strides = array<i32>} : memref<2x1xf32, #tpu.memory_space<vmem>>, vector<2x1xf32>,
    } else {
    }
    return
  }
  func.func @transform_0(%arg0: i32, %arg1: i32) -> (i32, i32, i32) {
    %c0_i32 = arith.constant 0 : i32
    %c0_i32_0 = arith.constant 0 : i32
    return %arg0, %c0_i32, %arg1 : i32, i32, i32
  }
  func.func @transform_1(%arg0: i32, %arg1: i32) -> (i32, i32) {
    %c0_i32 = arith.constant 0 : i32
    %c0_i32_0 = arith.constant 0 : i32
    return %arg0, %c0_i32 : i32, i32
  }
}

</mosaic_0001>

<llo_original>
// kernel: tpu_custom_call.1
$region0: #{tpu_custom_call.1}
  #allocation0 [shape = 'u32[]', space=smem, size = 0x4, offset = 0x4, fixed_abs, tag = 'smem constant byte address 0x4 - core index']
  #allocation1 [shape = 'u32[144,128]{1,0:T(1,128)}', space=vmem, size = 0x12000, scoped, tag = 'internal scratch']
  #allocation2 [shape = 'f32[2,3]{1,0:T(2,128)}', space=vmem, size = 0x400, scoped, tag = 'scratch operand']
  %s0 = inlined_call_operand.vmem [shape: f32[2,3,256], index: 0, kind: input, shape index: {}]
  %s1 = inlined_call_operand.vmem [shape: f32[2,1], index: 1, kind: output, shape index: {}]
  %s2 = sld [smem:[#allocation0]]
  $region22: #{tpu_custom_call.1} parent=0
    _
  %s4 = ssub.s32 1, %s2
  %s5 = scalar_select 0, %s4, %s2
  // Predicated region
  $region2: #{tpu_custom_call.1} parent=0 // pred_check
    _
  $region3: #{tpu_custom_call.1} parent=0 // pred_check_branch
    %7 = sbr.rel (0) target = $region5
  $region4: #{tpu_custom_call.1} parent=0 // pred_region
    _
  $region5: #{tpu_custom_call.1} parent=0 // pred_fallthru
    _
  %p8 = scmp.eq.s32.totalorder 0, 0
  // Predicated region
  $region6: #{tpu_custom_call.1} parent=0 // pred_check
    %p9 = pneg %p8
  $region7: #{tpu_custom_call.1} parent=0 // pred_check_branch
    %11 = sbr.rel (%p9) target = $region9
  $region8: #{tpu_custom_call.1} parent=0 // pred_region
    %vm12 = vcmask 17408
    %13 = vst.msk [vmem:[#allocation2] sm:$0x3] %vm12, 0.0
  $region9: #{tpu_custom_call.1} parent=0 // pred_fallthru
    _
  %v14 = vld [vmem:[#allocation2] sm:$0x3]
  %v15 = vld [vmem:[%s0] sm:$0x77]
  %v16 = vld [vmem:[%s0 + $0x8] sm:$0x77]
  %v19 = vcombine.high %v15, %v15
  %v20 = vcombine.high %v16, %v16
  %vm23 = vcmask 1042432
  %v24 = vsel %vm23, %v15, 0.0
  %v25 = vsel %vm23, %v19, 0.0
  %v26 = vadd.f32 %v24, %v25
  %27 = vadd.xlane.f32.xlu0 %v26
  %v28 = vpop.xlane.xlu0 %27
  %v29 = vsel %vm23, %v16, 0.0
  %v30 = vsel %vm23, %v20, 0.0
  %v31 = vadd.f32 %v29, %v30
  %32 = vadd.xlane.f32.xlu0 %v31
  %v33 = vpop.xlane.xlu0 %32
  %v36 = vlaneseq
  %v37 = vand.u32 %v36, 127
  %v38 = vlaneseq
  %v39 = vshrl.u32 %v38, 7
  %v40 = vsub.s32 %v37, %v39
  %v41 = vrot.slane %v28, %v40
  %v42 = vlaneseq
  %v43 = vshrl.u32 %v42, 7
  %v44 = vsub.s32 %v37, %v43
  %v45 = vrot.slane %v33, %v44
  %vm46 = vcmask 1041409
  %v47 = vsel %vm46, %v45, %v41
  %v49 = vadd.f32 %v14, %v47
  %vm50 = vcmask 17408
  %51 = vst.msk [vmem:[#allocation2] sm:$0x3] %vm50, %v49
  // Predicated region
  $region10: #{tpu_custom_call.1} parent=0 // pred_check
    %p52 = pneg %p8
  $region11: #{tpu_custom_call.1} parent=0 // pred_check_branch
    %54 = sbr.rel (%p52) target = $region13
  $region12: #{tpu_custom_call.1} parent=0 // pred_region
    %v55 = vld [vmem:[#allocation2] sm:$0x3]
    %v56 = vmul.f32 %v55, 0.00390625
    %58 = vrot.lane.b32.xlu0 %v56, 127
    %v59 = vpop.permute.xlu0 %58
    %v61 = vsub.f32 %v56, %v59
    %v62 = vmul.f32 %v61, %v61
    %63 = vrot.lane.b32.xlu0 %v56, 126
    %v64 = vpop.permute.xlu0 %63
    %v66 = vsub.f32 %v56, %v64
    %v67 = vmul.f32 %v66, %v66
    %v68 = vadd.f32 %v62, %v67
    %70 = vrot.lane.b32.xlu0 %v62, 127
    %v71 = vpop.permute.xlu0 %70
    %v73 = vadd.f32 %v68, %v71
    %v74 = vmul.f32 %v73, 0.33333334
    %vm75 = vcmask 1024
    %76 = vst.msk [vmem:[%s1] sm:$0x3] %vm75, %v74
  $region13: #{tpu_custom_call.1} parent=0 // pred_fallthru
    _
  // Predicated region
  $region14: #{tpu_custom_call.1} parent=0 // pred_check
    _
  $region15: #{tpu_custom_call.1} parent=0 // pred_check_branch
    %78 = sbr.rel (0) target = $region17
  $region16: #{tpu_custom_call.1} parent=0 // pred_region
    _
  $region17: #{tpu_custom_call.1} parent=0 // pred_fallthru
    _
  // Predicated region
  $region18: #{tpu_custom_call.1} parent=0 // pred_check
    _
  $region19: #{tpu_custom_call.1} parent=0 // pred_check_branch
    %80 = sbr.rel (0) target = $region21
  $region20: #{tpu_custom_call.1} parent=0 // pred_region
    _
  $region21: #{tpu_custom_call.1} parent=0 // pred_fallthru
    _

</llo_original>
